<compile_context>
chip_gen: v6e
topology: v6e:2x2x1
jax: 0.10.0
libtpu: 0.0.40
codegen_flags: <defaults>
</compile_context>

<pallas_src>
import jax
import jax.numpy as jnp
from jax.experimental import pallas as pl
from jax.experimental.pallas import tpu as pltpu


def _round_up(n: int, m: int) -> int:
    return (n + m - 1) // m * m


def _mlp_softmax_kernel(x_ref, w1_ref, b1_ref, w2_ref, b2_ref, w3_ref, b3_ref, o_ref):
    # x_ref: [tile_b, in_dim] (natural layout, f32 straight from HBM).
    # Weights arrive pre-transposed ([in, out]) and already bf16, so every dot
    # is a plain [M,K]@[K,N] bf16 MXU pass accumulating in f32.
    x = x_ref[...].astype(jnp.bfloat16)

    # h1 = relu(x @ W1^T + b1)          -> [tile_b, hid]
    h1 = jnp.dot(x, w1_ref[...], preferred_element_type=jnp.float32) + b1_ref[...]
    h1 = jnp.maximum(h1, 0.0)

    # h2 = relu(h1 @ W2^T + b2)         -> [tile_b, hid]
    h2 = jnp.dot(h1.astype(jnp.bfloat16), w2_ref[...],
                 preferred_element_type=jnp.float32) + b2_ref[...]
    h2 = jnp.maximum(h2, 0.0)

    # logits = h2 @ W3^T + b3           -> [tile_b, out_dim]
    logits = jnp.dot(h2.astype(jnp.bfloat16), w3_ref[...],
                     preferred_element_type=jnp.float32) + b3_ref[...]

    # Numerically stable softmax over the feature axis (last dim), f32 epilogue.
    m = jnp.max(logits, axis=-1, keepdims=True)
    e = jnp.exp(logits - m)
    denom = jnp.sum(e, axis=-1, keepdims=True)
    # Exact divide (denom is a single column vector) so rows sum to 1.
    o_ref[...] = (e / denom).astype(o_ref.dtype)


def optimization_model_forward(x, params, *, tile_b=None, out_dtype=jnp.float32):
    """x: [B, input_dim]. params: PyTorch-style w[out, in], b[out]."""
    B, in_dim = x.shape
    w1, b1 = params["w1"], params["b1"]
    w2, b2 = params["w2"], params["b2"]
    w3, b3 = params["w3"], params["b3"]
    hid = w1.shape[0]
    out_dim = w3.shape[0]

    if tile_b is None:
        b_pad8 = _round_up(B, 8)
        # At least 2 grid steps when B allows it (v7x megacore sharding), capped
        # at 8192 rows; x(f32)+out(f32) tiles double-buffered stay < 2 MiB.
        half = _round_up((b_pad8 + 1) // 2, 8)
        tile_b = max(8, min(8192, half))
    tile_b = _round_up(max(int(tile_b), 8), 8)

    Bp = _round_up(B, tile_b)
    xp = x if Bp == B else jnp.pad(x, ((0, Bp - B), (0, 0)))

    # Pre-transpose + bf16-cast the (tiny, ~3.5 KiB) weights once; they stay
    # resident across grid steps.  Biases remain f32 and broadcast over rows.
    w1t = jnp.transpose(w1).astype(jnp.bfloat16)   # [in_dim, hid]
    w2t = jnp.transpose(w2).astype(jnp.bfloat16)   # [hid, hid]
    w3t = jnp.transpose(w3).astype(jnp.bfloat16)   # [hid, out_dim]
    b1r = b1.reshape(1, hid).astype(jnp.float32)
    b2r = b2.reshape(1, hid).astype(jnp.float32)
    b3r = b3.reshape(1, out_dim).astype(jnp.float32)

    grid = (Bp // tile_b,)

    flops = 2 * Bp * (in_dim * hid + hid * hid + hid * out_dim)
    transcendentals = Bp * out_dim  # exps
    bytes_accessed = (
        xp.size * xp.dtype.itemsize
        + Bp * out_dim * jnp.dtype(out_dtype).itemsize
        + 2 * (w1t.size + w2t.size + w3t.size)
        + 4 * (b1r.size + b2r.size + b3r.size)
    )

    out = pl.pallas_call(
        _mlp_softmax_kernel,
        out_shape=jax.ShapeDtypeStruct((Bp, out_dim), out_dtype),
        grid_spec=pltpu.PrefetchScalarGridSpec(
            num_scalar_prefetch=0,
            grid=grid,
            in_specs=[
                pl.BlockSpec((tile_b, in_dim), lambda i: (i, 0)),   # x tile
                pl.BlockSpec((in_dim, hid), lambda i: (0, 0)),      # W1^T (resident)
                pl.BlockSpec((1, hid), lambda i: (0, 0)),           # b1
                pl.BlockSpec((hid, hid), lambda i: (0, 0)),         # W2^T
                pl.BlockSpec((1, hid), lambda i: (0, 0)),           # b2
                pl.BlockSpec((hid, out_dim), lambda i: (0, 0)),     # W3^T
                pl.BlockSpec((1, out_dim), lambda i: (0, 0)),       # b3
            ],
            out_specs=pl.BlockSpec((tile_b, out_dim), lambda i: (i, 0)),
        ),
        compiler_params=pltpu.CompilerParams(
            dimension_semantics=("parallel",),
        ),
        cost_estimate=pl.CostEstimate(
            flops=int(flops),
            transcendentals=int(transcendentals),
            bytes_accessed=int(bytes_accessed),
        ),
    )(xp, w1t, b1r, w2t, b2r, w3t, b3r)

    return out[:B] if Bp != B else out


def init_params(key, input_dim, hidden_dim, output_dim):
    """Deterministic init mirroring nn.Linear default (uniform +/- 1/sqrt(fan_in)).

    Weights stored PyTorch-style: w[out_features, in_features], b[out_features].
    """
    ks = jax.random.split(key, 6)

    def linear(kw, kb, fan_in, fan_out):
        bound = 1.0 / jnp.sqrt(fan_in)
        w = jax.random.uniform(kw, (fan_out, fan_in), jnp.float32, -bound, bound)
        b = jax.random.uniform(kb, (fan_out,), jnp.float32, -bound, bound)
        return w, b

    w1, b1 = linear(ks[0], ks[1], input_dim, hidden_dim)
    w2, b2 = linear(ks[2], ks[3], hidden_dim, hidden_dim)
    w3, b3 = linear(ks[4], ks[5], hidden_dim, output_dim)
    return {"w1": w1, "b1": b1, "w2": w2, "b2": b2, "w3": w3, "b3": b3}


if __name__ == "__main__":
    input_dim, hidden_dim, output_dim = 16, 32, 8
    batch = 256  # default tiling -> tile_b=128, grid=(2,): both v7x TCs get work

    key = jax.random.PRNGKey(0)
    k_params, k_x = jax.random.split(key)
    params = init_params(k_params, input_dim, hidden_dim, output_dim)
    x = jax.random.normal(k_x, (batch, input_dim), jnp.float32)

    fwd = jax.jit(optimization_model_forward)
    out = jax.block_until_ready(fwd(x, params))

    # Pure-JAX reference mirroring the kernel's numerics (bf16 MXU operands,
    # f32 accumulation, f32 softmax epilogue with exact divide).
    def ref_forward(x, p):
        xb = x.astype(jnp.bfloat16)
        w1b = p["w1"].astype(jnp.bfloat16).T
        w2b = p["w2"].astype(jnp.bfloat16).T
        w3b = p["w3"].astype(jnp.bfloat16).T
        h1 = jnp.maximum(
            jnp.dot(xb, w1b, preferred_element_type=jnp.float32) + p["b1"], 0.0)
        h2 = jnp.maximum(
            jnp.dot(h1.astype(jnp.bfloat16), w2b,
                    preferred_element_type=jnp.float32) + p["b2"], 0.0)
        logits = jnp.dot(h2.astype(jnp.bfloat16), w3b,
                         preferred_element_type=jnp.float32) + p["b3"]
        return jax.nn.softmax(logits, axis=-1)

    ref = ref_forward(x, params)

    assert out.shape == (batch, output_dim)
    assert jnp.allclose(out, ref, atol=2e-3), "mismatch vs reference"
    assert jnp.allclose(jnp.sum(out, axis=-1), 1.0, atol=1e-3), "rows must sum to 1"

    print("KERNEL_OK")
</pallas_src>

<mosaic_0001>
module attributes {stable_mosaic.version = 11 : i64} {
  func.func @_mlp_softmax_kernel(%arg0: i32, %arg1: memref<128x16xf32, #tpu.memory_space<vmem>>, %arg2: memref<16x32xbf16, #tpu.memory_space<vmem>>, %arg3: memref<1x32xf32, #tpu.memory_space<vmem>>, %arg4: memref<32x32xbf16, #tpu.memory_space<vmem>>, %arg5: memref<1x32xf32, #tpu.memory_space<vmem>>, %arg6: memref<32x8xbf16, #tpu.memory_space<vmem>>, %arg7: memref<1x8xf32, #tpu.memory_space<vmem>>, %arg8: memref<128x8xf32, #tpu.memory_space<vmem>>) attributes {dimension_semantics = [#tpu.dimension_semantics<parallel>], iteration_bounds = array<i64: 2>, scalar_prefetch = 0 : i64, scratch_operands = 0 : i64, tpu.core_type = #tpu.core_type<tc>, window_params = [{transform_indices = @transform_0, window_bounds = array<i64: 128, 16>}, {pipeline_mode = #tpu.pipeline_mode<synchronous>, transform_indices = @transform_1, window_bounds = array<i64: 16, 32>}, {pipeline_mode = #tpu.pipeline_mode<synchronous>, transform_indices = @transform_2, window_bounds = array<i64: 1, 32>}, {pipeline_mode = #tpu.pipeline_mode<synchronous>, transform_indices = @transform_3, window_bounds = array<i64: 32, 32>}, {pipeline_mode = #tpu.pipeline_mode<synchronous>, transform_indices = @transform_4, window_bounds = array<i64: 1, 32>}, {pipeline_mode = #tpu.pipeline_mode<synchronous>, transform_indices = @transform_5, window_bounds = array<i64: 32, 8>}, {pipeline_mode = #tpu.pipeline_mode<synchronous>, transform_indices = @transform_6, window_bounds = array<i64: 1, 8>}, {transform_indices = @transform_7, window_bounds = array<i64: 128, 8>}]} {
    %c0 = arith.constant 0 : index
    %c0_0 = arith.constant 0 : index
    %0 = vector.load %arg1[%c0, %c0_0] : memref<128x16xf32, #tpu.memory_space<vmem>>, vector<128x16xf32>
    %1 = arith.truncf %0 : vector<128x16xf32> to vector<128x16xbf16>
    %c0_1 = arith.constant 0 : index
    %c0_2 = arith.constant 0 : index
    %2 = vector.load %arg2[%c0_1, %c0_2] : memref<16x32xbf16, #tpu.memory_space<vmem>>, vector<16x32xbf16>
    %cst = arith.constant dense<0.000000e+00> : vector<128x32xf32>
    %3 = tpu.matmul %1, %2, %cst {dimension_numbers = #tpu.dot_dimension_numbers<[1], [0], [0], [1], [0, 0, 1, 1], [], []>} : vector<128x16xbf16>, vector<16x32xbf16>, vector<128x32xf32> -> vector<128x32xf32>
    %c0_3 = arith.constant 0 : index
    %c0_4 = arith.constant 0 : index
    %4 = vector.load %arg3[%c0_3, %c0_4] : memref<1x32xf32, #tpu.memory_space<vmem>>, vector<1x32xf32>
    %5 = vector.broadcast %4 : vector<1x32xf32> to vector<128x32xf32>
    %6 = arith.addf %3, %5 : vector<128x32xf32>
    %cst_5 = arith.constant 0.000000e+00 : f32
    %7 = vector.broadcast %cst_5 : f32 to vector<128x32xf32>
    %8 = arith.maximumf %6, %7 : vector<128x32xf32>
    %9 = arith.truncf %8 : vector<128x32xf32> to vector<128x32xbf16>
    %c0_6 = arith.constant 0 : index
    %c0_7 = arith.constant 0 : index
    %10 = vector.load %arg4[%c0_6, %c0_7] : memref<32x32xbf16, #tpu.memory_space<vmem>>, vector<32x32xbf16>
    %cst_8 = arith.constant dense<0.000000e+00> : vector<128x32xf32>
    %11 = tpu.matmul %9, %10, %cst_8 {dimension_numbers = #tpu.dot_dimension_numbers<[1], [0], [0], [1], [0, 0, 1, 1], [], []>} : vector<128x32xbf16>, vector<32x32xbf16>, vector<128x32xf32> -> vector<128x32xf32>
    %c0_9 = arith.constant 0 : index
    %c0_10 = arith.constant 0 : index
    %12 = vector.load %arg5[%c0_9, %c0_10] : memref<1x32xf32, #tpu.memory_space<vmem>>, vector<1x32xf32>
    %13 = vector.broadcast %12 : vector<1x32xf32> to vector<128x32xf32>
    %14 = arith.addf %11, %13 : vector<128x32xf32>
    %cst_11 = arith.constant 0.000000e+00 : f32
    %15 = vector.broadcast %cst_11 : f32 to vector<128x32xf32>
    %16 = arith.maximumf %14, %15 : vector<128x32xf32>
    %17 = arith.truncf %16 : vector<128x32xf32> to vector<128x32xbf16>
    %c0_12 = arith.constant 0 : index
    %c0_13 = arith.constant 0 : index
    %18 = vector.load %arg6[%c0_12, %c0_13] : memref<32x8xbf16, #tpu.memory_space<vmem>>, vector<32x8xbf16>
    %cst_14 = arith.constant dense<0.000000e+00> : vector<128x8xf32>
    %19 = tpu.matmul %17, %18, %cst_14 {dimension_numbers = #tpu.dot_dimension_numbers<[1], [0], [0], [1], [0, 0, 1, 1], [], []>} : vector<128x32xbf16>, vector<32x8xbf16>, vector<128x8xf32> -> vector<128x8xf32>
    %c0_15 = arith.constant 0 : index
    %c0_16 = arith.constant 0 : index
    %20 = vector.load %arg7[%c0_15, %c0_16] : memref<1x8xf32, #tpu.memory_space<vmem>>, vector<1x8xf32>
    %21 = vector.broadcast %20 : vector<1x8xf32> to vector<128x8xf32>
    %22 = arith.addf %19, %21 : vector<128x8xf32>
    %cst_17 = arith.constant dense<0xFF800000> : vector<128xf32>
    %23 = vector.multi_reduction <maximumf>, %22, %cst_17 [1] : vector<128x8xf32> to vector<128xf32>
    %24 = vector.shape_cast %23 : vector<128xf32> to vector<128x1xf32>
    %25 = vector.broadcast %24 : vector<128x1xf32> to vector<128x8xf32>
    %26 = arith.subf %22, %25 : vector<128x8xf32>
    %27 = math.exp %26 : vector<128x8xf32>
    %cst_18 = arith.constant dense<0.000000e+00> : vector<128xf32>
    %28 = vector.multi_reduction <add>, %27, %cst_18 [1] : vector<128x8xf32> to vector<128xf32>
    %29 = vector.shape_cast %28 : vector<128xf32> to vector<128x1xf32>
    %30 = vector.broadcast %29 : vector<128x1xf32> to vector<128x8xf32>
    %31 = arith.divf %27, %30 : vector<128x8xf32>
    %c0_19 = arith.constant 0 : index
    %c0_20 = arith.constant 0 : index
    %32 = vector.load %arg8[%c0_19, %c0_20] : memref<128x8xf32, #tpu.memory_space<vmem>>, vector<128x8xf32>
    tpu.vector_store %arg8[%c0_19, %c0_20], %31 {strides = array<i32>} : memref<128x8xf32, #tpu.memory_space<vmem>>, vector<128x8xf32>,
    return
  }
  func.func @transform_0(%arg0: i32) -> (i32, i32) {
    %c0_i32 = arith.constant 0 : i32
    %c0_i32_0 = arith.constant 0 : i32
    return %arg0, %c0_i32 : i32, i32
  }
  func.func @transform_1(%arg0: i32) -> (i32, i32) {
    %c0_i32 = arith.constant 0 : i32
    %c0_i32_0 = arith.constant 0 : i32
    %c0_i32_1 = arith.constant 0 : i32
    return %c0_i32, %c0_i32_0 : i32, i32
  }
  func.func @transform_2(%arg0: i32) -> (i32, i32) {
    %c0_i32 = arith.constant 0 : i32
    %c0_i32_0 = arith.constant 0 : i32
    %c0_i32_1 = arith.constant 0 : i32
    return %c0_i32, %c0_i32_0 : i32, i32
  }
  func.func @transform_3(%arg0: i32) -> (i32, i32) {
    %c0_i32 = arith.constant 0 : i32
    %c0_i32_0 = arith.constant 0 : i32
    %c0_i32_1 = arith.constant 0 : i32
    return %c0_i32, %c0_i32_0 : i32, i32
  }
  func.func @transform_4(%arg0: i32) -> (i32, i32) {
    %c0_i32 = arith.constant 0 : i32
    %c0_i32_0 = arith.constant 0 : i32
    %c0_i32_1 = arith.constant 0 : i32
    return %c0_i32, %c0_i32_0 : i32, i32
  }
  func.func @transform_5(%arg0: i32) -> (i32, i32) {
    %c0_i32 = arith.constant 0 : i32
    %c0_i32_0 = arith.constant 0 : i32
    %c0_i32_1 = arith.constant 0 : i32
    return %c0_i32, %c0_i32_0 : i32, i32
  }
  func.func @transform_6(%arg0: i32) -> (i32, i32) {
    %c0_i32 = arith.constant 0 : i32
    %c0_i32_0 = arith.constant 0 : i32
    %c0_i32_1 = arith.constant 0 : i32
    return %c0_i32, %c0_i32_0 : i32, i32
  }
  func.func @transform_7(%arg0: i32) -> (i32, i32) {
    %c0_i32 = arith.constant 0 : i32
    %c0_i32_0 = arith.constant 0 : i32
    return %arg0, %c0_i32 : i32, i32
  }
}

</mosaic_0001>

<llo_original>
// kernel: optimization_model_forward.1
$region0: #{optimization_model_forward.1}
  #allocation0 [shape = 'u32[]', space=smem, size = 0x4, offset = 0x4, fixed_abs, tag = 'smem constant byte address 0x4 - core index']
  #allocation1 [shape = 'u32[144,128]{1,0:T(1,128)}', space=vmem, size = 0x12000, scoped, tag = 'internal scratch']
  %s0 = inlined_call_operand.vmem [shape: f32[256,16], index: 0, kind: input, shape index: {}]
  %s1 = inlined_call_operand.vmem [shape: bf16[16,32], index: 1, kind: input, shape index: {}]
  %s2 = inlined_call_operand.vmem [shape: f32[1,32], index: 2, kind: input, shape index: {}]
  %s3 = inlined_call_operand.vmem [shape: bf16[32,32], index: 3, kind: input, shape index: {}]
  %s4 = inlined_call_operand.vmem [shape: f32[1,32], index: 4, kind: input, shape index: {}]
  %s5 = inlined_call_operand.vmem [shape: bf16[32,8], index: 5, kind: input, shape index: {}]
  %s6 = inlined_call_operand.vmem [shape: f32[1,8], index: 6, kind: input, shape index: {}]
  %s7 = inlined_call_operand.vmem [shape: f32[256,8], index: 7, kind: output, shape index: {}]
  %s8 = sld [smem:[#allocation0]]
  $region61: #{optimization_model_forward.1} parent=0
    _
  %s10 = ssub.s32 1, %s8
  %s11 = scalar_select 0, %s10, %s8
  loop: start=0, step=1, limit=4
  $region2: #{optimization_model_forward.1} parent=0 // loop_pre_header
    _
  $region3: #{optimization_model_forward.1} parent=0 // loop_header
    %s13 = sphi 0, %s17
    %p14 = scmp.ge.s32.totalorder %s13, 4
    %s23 = sphi 0, %s25
    %s26 = sphi 0, %s23
    %s27 = sphi 0, %s26
    %s43 = sphi 0, %s27
    %s47 = sphi 0, %s47
    %s49 = sphi 0, %s47
    %s50 = sphi 0, %s49
    %s64 = sphi 0, %s50
    %s68 = sphi 0, %s68
    %s70 = sphi 0, %s68
    %s71 = sphi 0, %s70
    %s85 = sphi 0, %s71
    %s89 = sphi 0, %s89
    %s91 = sphi 0, %s89
    %s92 = sphi 0, %s91
    %s106 = sphi 0, %s92
    %s110 = sphi 0, %s110
    %s112 = sphi 0, %s110
    %s113 = sphi 0, %s112
    %s127 = sphi 0, %s113
    %s131 = sphi 0, %s131
    %s133 = sphi 0, %s131
    %s134 = sphi 0, %s133
    %s148 = sphi 0, %s134
    %s152 = sphi 0, %s152
    %s154 = sphi 0, %s152
    %s155 = sphi 0, %s154
    %s169 = sphi 0, %s155
    %s175 = sphi 0, %s177
    %s178 = sphi 0, %s175
    %s179 = sphi 0, %s178
    %s195 = sphi 0, %s179
  $region4: #{optimization_model_forward.1} parent=0 // loop_header_branch
    %16 = sbr.rel (%p14) target = $region8
  $region5: #{optimization_model_forward.1} parent=0 // loop_body
    %s18 = ssub.s32 %s13, 1
    %s19 = ssub.s32 %s13, 2
    %s20 = sadd.s32 %s13, 1
    %s21 = ssub.s32 %s13, %s20
    %p22 = scmp.eq.s32.totalorder %s21, 0
    %s24 = sadd.s32 %s23, 1
    %s25 = scalar_select %p22, %s23, %s24
    %p28 = pneg %p22
    %p29 = scmp.eq.s32.totalorder %s13, 1
    %p30 = por %p28, %p29
    %p31 = scmp.ne.s32.totalorder %s23, %s26
    %p32 = scmp.eq.s32.totalorder %s13, 0
    %p33 = por %p31, %p32
    %p34 = scmp.ne.s32.totalorder %s23, %s26
    %p35 = scmp.eq.s32.totalorder %s18, 1
    %p36 = por %p34, %p35
    %p37 = scmp.ne.s32.totalorder %s26, %s27
    %p38 = scmp.eq.s32.totalorder %s18, 0
    %p39 = por %p37, %p38
    %p40 = scmp.ne.s32.totalorder %s26, %s27
    %p41 = scmp.eq.s32.totalorder %s19, 1
    %p42 = por %p40, %p41
    %p44 = scmp.ne.s32.totalorder %s27, %s43
    %p45 = scmp.eq.s32.totalorder %s19, 0
    %p46 = por %p44, %p45
    %s48 = sadd.s32 %s47, 1
    %p51 = scmp.eq.s32.totalorder %s13, 1
    %p52 = scmp.ne.s32.totalorder %s47, %s49
    %p53 = scmp.eq.s32.totalorder %s13, 0
    %p54 = por %p52, %p53
    %p55 = scmp.ne.s32.totalorder %s47, %s49
    %p56 = scmp.eq.s32.totalorder %s18, 1
    %p57 = por %p55, %p56
    %p58 = scmp.ne.s32.totalorder %s49, %s50
    %p59 = scmp.eq.s32.totalorder %s18, 0
    %p60 = por %p58, %p59
    %p61 = scmp.ne.s32.totalorder %s49, %s50
    %p62 = scmp.eq.s32.totalorder %s19, 1
    %p63 = por %p61, %p62
    %p65 = scmp.ne.s32.totalorder %s50, %s64
    %p66 = scmp.eq.s32.totalorder %s19, 0
    %p67 = por %p65, %p66
    %s69 = sadd.s32 %s68, 1
    %p72 = scmp.eq.s32.totalorder %s13, 1
    %p73 = scmp.ne.s32.totalorder %s68, %s70
    %p74 = scmp.eq.s32.totalorder %s13, 0
    %p75 = por %p73, %p74
    %p76 = scmp.ne.s32.totalorder %s68, %s70
    %p77 = scmp.eq.s32.totalorder %s18, 1
    %p78 = por %p76, %p77
    %p79 = scmp.ne.s32.totalorder %s70, %s71
    %p80 = scmp.eq.s32.totalorder %s18, 0
    %p81 = por %p79, %p80
    %p82 = scmp.ne.s32.totalorder %s70, %s71
    %p83 = scmp.eq.s32.totalorder %s19, 1
    %p84 = por %p82, %p83
    %p86 = scmp.ne.s32.totalorder %s71, %s85
    %p87 = scmp.eq.s32.totalorder %s19, 0
    %p88 = por %p86, %p87
    %s90 = sadd.s32 %s89, 1
    %p93 = scmp.eq.s32.totalorder %s13, 1
    %p94 = scmp.ne.s32.totalorder %s89, %s91
    %p95 = scmp.eq.s32.totalorder %s13, 0
    %p96 = por %p94, %p95
    %p97 = scmp.ne.s32.totalorder %s89, %s91
    %p98 = scmp.eq.s32.totalorder %s18, 1
    %p99 = por %p97, %p98
    %p100 = scmp.ne.s32.totalorder %s91, %s92
    %p101 = scmp.eq.s32.totalorder %s18, 0
    %p102 = por %p100, %p101
    %p103 = scmp.ne.s32.totalorder %s91, %s92
    %p104 = scmp.eq.s32.totalorder %s19, 1
    %p105 = por %p103, %p104
    %p107 = scmp.ne.s32.totalorder %s92, %s106
    %p108 = scmp.eq.s32.totalorder %s19, 0
    %p109 = por %p107, %p108
    %s111 = sadd.s32 %s110, 1
    %p114 = scmp.eq.s32.totalorder %s13, 1
    %p115 = scmp.ne.s32.totalorder %s110, %s112
    %p116 = scmp.eq.s32.totalorder %s13, 0
    %p117 = por %p115, %p116
    %p118 = scmp.ne.s32.totalorder %s110, %s112
    %p119 = scmp.eq.s32.totalorder %s18, 1
    %p120 = por %p118, %p119
    %p121 = scmp.ne.s32.totalorder %s112, %s113
    %p122 = scmp.eq.s32.totalorder %s18, 0
    %p123 = por %p121, %p122
    %p124 = scmp.ne.s32.totalorder %s112, %s113
    %p125 = scmp.eq.s32.totalorder %s19, 1
    %p126 = por %p124, %p125
    %p128 = scmp.ne.s32.totalorder %s113, %s127
    %p129 = scmp.eq.s32.totalorder %s19, 0
    %p130 = por %p128, %p129
    %s132 = sadd.s32 %s131, 1
    %p135 = scmp.eq.s32.totalorder %s13, 1
    %p136 = scmp.ne.s32.totalorder %s131, %s133
    %p137 = scmp.eq.s32.totalorder %s13, 0
    %p138 = por %p136, %p137
    %p139 = scmp.ne.s32.totalorder %s131, %s133
    %p140 = scmp.eq.s32.totalorder %s18, 1
    %p141 = por %p139, %p140
    %p142 = scmp.ne.s32.totalorder %s133, %s134
    %p143 = scmp.eq.s32.totalorder %s18, 0
    %p144 = por %p142, %p143
    %p145 = scmp.ne.s32.totalorder %s133, %s134
    %p146 = scmp.eq.s32.totalorder %s19, 1
    %p147 = por %p145, %p146
    %p149 = scmp.ne.s32.totalorder %s134, %s148
    %p150 = scmp.eq.s32.totalorder %s19, 0
    %p151 = por %p149, %p150
    %s153 = sadd.s32 %s152, 1
    %p156 = scmp.eq.s32.totalorder %s13, 1
    %p157 = scmp.ne.s32.totalorder %s152, %s154
    %p158 = scmp.eq.s32.totalorder %s13, 0
    %p159 = por %p157, %p158
    %p160 = scmp.ne.s32.totalorder %s152, %s154
    %p161 = scmp.eq.s32.totalorder %s18, 1
    %p162 = por %p160, %p161
    %p163 = scmp.ne.s32.totalorder %s154, %s155
    %p164 = scmp.eq.s32.totalorder %s18, 0
    %p165 = por %p163, %p164
    %p166 = scmp.ne.s32.totalorder %s154, %s155
    %p167 = scmp.eq.s32.totalorder %s19, 1
    %p168 = por %p166, %p167
    %p170 = scmp.ne.s32.totalorder %s155, %s169
    %p171 = scmp.eq.s32.totalorder %s19, 0
    %p172 = por %p170, %p171
    %s173 = ssub.s32 %s13, %s20
    %p174 = scmp.eq.s32.totalorder %s173, 0
    %s176 = sadd.s32 %s175, 1
    %s177 = scalar_select %p174, %s175, %s176
    %p180 = pneg %p174
    %p181 = scmp.eq.s32.totalorder %s13, 1
    %p182 = por %p180, %p181
    %p183 = scmp.ne.s32.totalorder %s175, %s178
    %p184 = scmp.eq.s32.totalorder %s13, 0
    %p185 = por %p183, %p184
    %p186 = scmp.ne.s32.totalorder %s175, %s178
    %p187 = scmp.eq.s32.totalorder %s18, 1
    %p188 = por %p186, %p187
    %p189 = scmp.ne.s32.totalorder %s178, %s179
    %p190 = scmp.eq.s32.totalorder %s18, 0
    %p191 = por %p189, %p190
    %p192 = scmp.ne.s32.totalorder %s178, %s179
    %p193 = scmp.eq.s32.totalorder %s19, 1
    %p194 = por %p192, %p193
    %p196 = scmp.ne.s32.totalorder %s179, %s195
    %p197 = scmp.eq.s32.totalorder %s19, 0
    %p198 = por %p196, %p197
    %p199 = scmp.le.s32.totalorder 1, %s13
    %p200 = scmp.lt.s32.totalorder %s13, 3
    %p201 = pnand %p199, %p200
    %p202 = pneg %p201
    // Predicated region
    $region9: #{optimization_model_forward.1} parent=5 // pred_check
      _
    $region10: #{optimization_model_forward.1} parent=5 // pred_check_branch
      %204 = sbr.rel (%p201) target = $region12
    $region11: #{optimization_model_forward.1} parent=5 // pred_region
      %s205 = ssub.s32 %s13, 1
      // Predicated region
      $region13: #{optimization_model_forward.1} parent=11 // pred_check
        %p206 = pneg %p60
      $region14: #{optimization_model_forward.1} parent=11 // pred_check_branch
        %208 = sbr.rel (%p206) target = $region16
      $region15: #{optimization_model_forward.1} parent=11 // pred_region
        _
      $region16: #{optimization_model_forward.1} parent=11 // pred_fallthru
        _
      // Predicated region
      $region17: #{optimization_model_forward.1} parent=11 // pred_check
        %p209 = pneg %p81
      $region18: #{optimization_model_forward.1} parent=11 // pred_check_branch
        %211 = sbr.rel (%p209) target = $region20
      $region19: #{optimization_model_forward.1} parent=11 // pred_region
        _
      $region20: #{optimization_model_forward.1} parent=11 // pred_fallthru
        _
      // Predicated region
      $region21: #{optimization_model_forward.1} parent=11 // pred_check
        %p212 = pneg %p102
      $region22: #{optimization_model_forward.1} parent=11 // pred_check_branch
        %214 = sbr.rel (%p212) target = $region24
      $region23: #{optimization_model_forward.1} parent=11 // pred_region
        _
      $region24: #{optimization_model_forward.1} parent=11 // pred_fallthru
        _
      // Predicated region
      $region25: #{optimization_model_forward.1} parent=11 // pred_check
        %p215 = pneg %p123
      $region26: #{optimization_model_forward.1} parent=11 // pred_check_branch
        %217 = sbr.rel (%p215) target = $region28
      $region27: #{optimization_model_forward.1} parent=11 // pred_region
        _
      $region28: #{optimization_model_forward.1} parent=11 // pred_fallthru
        _
      // Predicated region
      $region29: #{optimization_model_forward.1} parent=11 // pred_check
        %p218 = pneg %p144
      $region30: #{optimization_model_forward.1} parent=11 // pred_check_branch
        %220 = sbr.rel (%p218) target = $region32
      $region31: #{optimization_model_forward.1} parent=11 // pred_region
        _
      $region32: #{optimization_model_forward.1} parent=11 // pred_fallthru
        _
      // Predicated region
      $region33: #{optimization_model_forward.1} parent=11 // pred_check
        %p221 = pneg %p165
      $region34: #{optimization_model_forward.1} parent=11 // pred_check_branch
        %223 = sbr.rel (%p221) target = $region36
      $region35: #{optimization_model_forward.1} parent=11 // pred_region
        _
      $region36: #{optimization_model_forward.1} parent=11 // pred_fallthru
        _
    $region12: #{optimization_model_forward.1} parent=5 // pred_fallthru
      _
    %p224 = scmp.lt.s32.totalorder %s13, 2
    // Predicated region
    $region37: #{optimization_model_forward.1} parent=5 // pred_check
      %p225 = pneg %p224
    $region38: #{optimization_model_forward.1} parent=5 // pred_check_branch
      %227 = sbr.rel (%p225) target = $region40
    $region39: #{optimization_model_forward.1} parent=5 // pred_region
      // Predicated region
      $region41: #{optimization_model_forward.1} parent=39 // pred_check
        %p228 = pneg %p33
      $region42: #{optimization_model_forward.1} parent=39 // pred_check_branch
        %230 = sbr.rel (%p228) target = $region44
      $region43: #{optimization_model_forward.1} parent=39 // pred_region
        %s231 = smul.u32 16, %s13
        %p232 = scmp.lt.s32.totalorder %s231, 31
        %s233 = scalar_select %p232, %s231, 31
        %s234 = smul.addr %s233, 8
        %s235 = scalar_lea.vmem %s0, %s234
        %s236 = smul.u32 16, %s13
      $region44: #{optimization_model_forward.1} parent=39 // pred_fallthru
        _
    $region40: #{optimization_model_forward.1} parent=5 // pred_fallthru
      _
    %p237 = scmp.le.s32.totalorder 1, %s13
    %p238 = scmp.lt.s32.totalorder %s13, 3
    %p239 = pnand %p237, %p238
    %p240 = pneg %p239
    // Predicated region
    $region45: #{optimization_model_forward.1} parent=5 // pred_check
      _
    $region46: #{optimization_model_forward.1} parent=5 // pred_check_branch
      %242 = sbr.rel (%p239) target = $region48
    $region47: #{optimization_model_forward.1} parent=5 // pred_region
      %s243 = ssub.s32 %s13, 1
      %s244 = smul.u32 16, %s18
      %p245 = scmp.lt.s32.totalorder %s244, 31
      %s246 = scalar_select %p245, %s244, 31
      %s247 = smul.addr %s246, 8
      %s248 = scalar_lea.vmem %s0, %s247
      %p249 = pneg %p39
      %p250 = pneg %p36
      %p251 = pneg %p60
      %p252 = pneg %p57
      %p253 = pneg %p81
      %p254 = pneg %p78
      %p255 = pneg %p102
      %p256 = pneg %p99
      %p257 = pneg %p123
      %p258 = pneg %p120
      %p259 = pneg %p144
      %p260 = pneg %p141
      %p261 = pneg %p165
      %p262 = pneg %p162
      %p263 = pneg %p191
      %p264 = pneg %p188
      %s265 = smul.u32 16, %s18
      %p266 = scmp.lt.s32.totalorder %s265, 31
      %s267 = scalar_select %p266, %s265, 31
      %s268 = smul.addr %s267, 8
      %s269 = scalar_lea.vmem %s7, %s268
      %s270 = smul.u32 16, %s18
      %p271 = scmp.lt.s32.totalorder %s270, 31
      %s272 = scalar_select %p271, %s270, 31
      %s273 = smul.addr %s272, 8
      %s274 = scalar_lea.vmem %s0, %s273
      %s275 = smul.u32 16, %s18
      %s276 = smul.u32 16, %s18
      %p277 = scmp.lt.s32.totalorder %s276, 31
      %s278 = scalar_select %p277, %s276, 31
      %s279 = smul.addr %s278, 8
      %s280 = scalar_lea.vmem %s7, %s279
      %s281 = smul.u32 16, %s18
      %v283 = vld [vmem:[%s274] sm:$0xff]
      %v284 = vld [vmem:[%s274 + $0x8] sm:$0xff]
      %v285 = vld [vmem:[%s274 + $0x10] sm:$0xff]
      %v286 = vld [vmem:[%s274 + $0x18] sm:$0xff]
      %v287 = vld [vmem:[%s274 + $0x20] sm:$0xff]
      %v288 = vld [vmem:[%s274 + $0x28] sm:$0xff]
      %v289 = vld [vmem:[%s274 + $0x30] sm:$0xff]
      %v290 = vld [vmem:[%s274 + $0x38] sm:$0xff]
      %v291 = vld [vmem:[%s274 + $0x40] sm:$0xff]
      %v292 = vld [vmem:[%s274 + $0x48] sm:$0xff]
      %v293 = vld [vmem:[%s274 + $0x50] sm:$0xff]
      %v294 = vld [vmem:[%s274 + $0x58] sm:$0xff]
      %v295 = vld [vmem:[%s274 + $0x60] sm:$0xff]
      %v296 = vld [vmem:[%s274 + $0x68] sm:$0xff]
      %v297 = vld [vmem:[%s274 + $0x70] sm:$0xff]
      %v298 = vld [vmem:[%s274 + $0x78] sm:$0xff]
      %v299 = vpack.c.bf16 %v284, %v283
      %v300 = vpack.c.bf16 %v286, %v285
      %v301 = vpack.c.bf16 %v288, %v287
      %v302 = vpack.c.bf16 %v290, %v289
      %v303 = vpack.c.bf16 %v292, %v291
      %v304 = vpack.c.bf16 %v294, %v293
      %v305 = vpack.c.bf16 %v296, %v295
      %v306 = vpack.c.bf16 %v298, %v297
      %v307 = vld [vmem:[%s1] sm:$0xf]
      %v308 = vld [vmem:[%s1 + $0x4] sm:$0xf]
      %v309 = vld [vmem:[%s2] sm:$0x1]
      %v311 = vlaneseq
      %v312 = vshrl.u32 %v311, 7
      %v313 = vsub.s32 0, %v312
      %v314 = vrot.slane %v309, %v313
      %v318 = vunpack.c.l.b16 %v307
      %v319 = vunpack.c.l.b16 %v308
      %v320 = vpack.c.b16 %v319, %v318
      %vm322 = vcmask 130048
      %v324 = vsel %vm322, %v299, 0
      %v327 = vsel %vm322, %v300, 0
      %v330 = vsel %vm322, %v301, 0
      %v333 = vsel %vm322, %v302, 0
      %v336 = vsel %vm322, %v303, 0
      %v339 = vsel %vm322, %v304, 0
      %v342 = vsel %vm322, %v305, 0
      %v345 = vsel %vm322, %v306, 0
      %347 = vmatprep.subr.bf16.mxu0 0
      %348 = vmatpush1.bf16.msra.mxu0 0
      %349 = vmatprep.subr.bf16.mxu0 0
      %350 = vmatpush1.bf16.msra.mxu0 0
      %351 = vmatprep.subr.bf16.mxu0 0
      %352 = vmatpush1.bf16.msra.mxu0 0
      %353 = vmatprep.subr.bf16.mxu0 0
      %354 = vmatpush1.bf16.msra.mxu0 0
      %355 = vmatprep.subr.bf16.mxu0 0
      %356 = vmatpush1.bf16.msra.mxu0 0
      %357 = vmatprep.subr.bf16.mxu0 0
      %358 = vmatpush1.bf16.msra.mxu0 0
      %359 = vmatprep.subr.bf16.mxu0 0
      %360 = vmatpush1.bf16.msra.mxu0 0
      %361 = vmatprep.subr.bf16.mxu0 0
      %362 = vmatpush1.bf16.msra.mxu0 %v320
      %363 = vmatprep.subr.bf16.mxu0 0
      %364 = vmatpush2.bf16.msra.mxu0 0
      %365 = vmatprep.subr.bf16.mxu0 0
      %366 = vmatpush2.bf16.msra.mxu0 0
      %367 = vmatprep.subr.bf16.mxu0 0
      %368 = vmatpush2.bf16.msra.mxu0 0
      %369 = vmatprep.subr.bf16.mxu0 0
      %370 = vmatpush2.bf16.msra.mxu0 0
      %371 = vmatprep.subr.bf16.mxu0 0
      %372 = vmatpush2.bf16.msra.mxu0 0
      %373 = vmatprep.subr.bf16.mxu0 0
      %374 = vmatpush2.bf16.msra.mxu0 0
      %375 = vmatprep.subr.bf16.mxu0 0
      %376 = vmatpush2.bf16.msra.mxu0 0
      %377 = vmatprep.subr.bf16.mxu0 0
      %378 = vmatpush2.bf16.msra.mxu0 0
      %379 = vmatprep.mubr.bf16.mxu0 0
      %380 = vmatmul.mubr.bf16.gmra.mxu0 %v324
      %v381 = vpop.f32.mrf.mxu0
      %v382 = vadd.f32 %v314, %v381
      %v383 = vpop.f32.mrf.mxu0
      %v384 = vpop.f32.mrf.mxu0
      %v385 = vadd.f32 %v314, %v384
      %v386 = vpop.f32.mrf.mxu0
      %387 = vmatprep.mubr.bf16.mxu0 0
      %388 = vmatmul.mubr.bf16.gmra.mxu0 %v327
      %v389 = vpop.f32.mrf.mxu0
      %v390 = vadd.f32 %v314, %v389
      %v391 = vpop.f32.mrf.mxu0
      %v392 = vpop.f32.mrf.mxu0
      %v393 = vadd.f32 %v314, %v392
      %v394 = vpop.f32.mrf.mxu0
      %395 = vmatprep.mubr.bf16.mxu0 0
      %396 = vmatmul.mubr.bf16.gmra.mxu0 %v330
      %v397 = vpop.f32.mrf.mxu0
      %v398 = vadd.f32 %v314, %v397
      %v399 = vpop.f32.mrf.mxu0
      %v400 = vpop.f32.mrf.mxu0
      %v401 = vadd.f32 %v314, %v400
      %v402 = vpop.f32.mrf.mxu0
      %403 = vmatprep.mubr.bf16.mxu0 0
      %404 = vmatmul.mubr.bf16.gmra.mxu0 %v333
      %v405 = vpop.f32.mrf.mxu0
      %v406 = vadd.f32 %v314, %v405
      %v407 = vpop.f32.mrf.mxu0
      %v408 = vpop.f32.mrf.mxu0
      %v409 = vadd.f32 %v314, %v408
      %v410 = vpop.f32.mrf.mxu0
      %411 = vmatprep.mubr.bf16.mxu0 0
      %412 = vmatmul.mubr.bf16.gmra.mxu0 %v336
      %v413 = vpop.f32.mrf.mxu0
      %v414 = vadd.f32 %v314, %v413
      %v415 = vpop.f32.mrf.mxu0
      %v416 = vpop.f32.mrf.mxu0
      %v417 = vadd.f32 %v314, %v416
      %v418 = vpop.f32.mrf.mxu0
      %419 = vmatprep.mubr.bf16.mxu0 0
      %420 = vmatmul.mubr.bf16.gmra.mxu0 %v339
      %v421 = vpop.f32.mrf.mxu0
      %v422 = vadd.f32 %v314, %v421
      %v423 = vpop.f32.mrf.mxu0
      %v424 = vpop.f32.mrf.mxu0
      %v425 = vadd.f32 %v314, %v424
      %v426 = vpop.f32.mrf.mxu0
      %427 = vmatprep.mubr.bf16.mxu0 0
      %428 = vmatmul.mubr.bf16.gmra.mxu0 %v342
      %v429 = vpop.f32.mrf.mxu0
      %v430 = vadd.f32 %v314, %v429
      %v431 = vpop.f32.mrf.mxu0
      %v432 = vpop.f32.mrf.mxu0
      %v433 = vadd.f32 %v314, %v432
      %v434 = vpop.f32.mrf.mxu0
      %435 = vmatprep.mubr.bf16.mxu0 0
      %436 = vmatmul.mubr.bf16.gmra.mxu0 %v345
      %v437 = vpop.f32.mrf.mxu0
      %v438 = vadd.f32 %v314, %v437
      %v439 = vpop.f32.mrf.mxu0
      %v440 = vpop.f32.mrf.mxu0
      %v441 = vadd.f32 %v314, %v440
      %v442 = vpop.f32.mrf.mxu0
      %443 = vdwg.mxu0
      %v444 = vmax.f32 %v382, 0.0
      %v445 = vmax.f32 %v385, 0.0
      %v446 = vmax.f32 %v390, 0.0
      %v447 = vmax.f32 %v393, 0.0
      %v448 = vmax.f32 %v398, 0.0
      %v449 = vmax.f32 %v401, 0.0
      %v450 = vmax.f32 %v406, 0.0
      %v451 = vmax.f32 %v409, 0.0
      %v452 = vmax.f32 %v414, 0.0
      %v453 = vmax.f32 %v417, 0.0
      %v454 = vmax.f32 %v422, 0.0
      %v455 = vmax.f32 %v425, 0.0
      %v456 = vmax.f32 %v430, 0.0
      %v457 = vmax.f32 %v433, 0.0
      %v458 = vmax.f32 %v438, 0.0
      %v459 = vmax.f32 %v441, 0.0
      %v460 = vpack.c.bf16 %v445, %v444
      %v461 = vpack.c.bf16 %v447, %v446
      %v462 = vpack.c.bf16 %v449, %v448
      %v463 = vpack.c.bf16 %v451, %v450
      %v464 = vpack.c.bf16 %v453, %v452
      %v465 = vpack.c.bf16 %v455, %v454
      %v466 = vpack.c.bf16 %v457, %v456
      %v467 = vpack.c.bf16 %v459, %v458
      %v468 = vld [vmem:[%s3] sm:$0xf]
      %v469 = vld [vmem:[%s3 + $0x4] sm:$0xf]
      %v470 = vld [vmem:[%s3 + $0x8] sm:$0xf]
      %v471 = vld [vmem:[%s3 + $0xc] sm:$0xf]
      %v472 = vld [vmem:[%s4] sm:$0x1]
      %v474 = vlaneseq
      %v475 = vshrl.u32 %v474, 7
      %v476 = vsub.s32 0, %v475
      %v477 = vrot.slane %v472, %v476
      %v483 = vunpack.c.l.b16 %v468
      %v484 = vunpack.c.l.b16 %v469
      %v485 = vunpack.c.l.b16 %v470
      %v486 = vunpack.c.l.b16 %v471
      %v487 = vpack.c.b16 %v484, %v483
      %v488 = vpack.c.b16 %v486, %v485
      %vm491 = vcmask 261120
      %v493 = vsel %vm491, %v460, 0
      %v496 = vsel %vm491, %v461, 0
      %v499 = vsel %vm491, %v462, 0
      %v502 = vsel %vm491, %v463, 0
      %v505 = vsel %vm491, %v464, 0
      %v508 = vsel %vm491, %v465, 0
      %v511 = vsel %vm491, %v466, 0
      %v514 = vsel %vm491, %v467, 0
      %516 = vmatprep.subr.bf16.mxu0 0
      %517 = vmatpush1.bf16.msra.mxu0 0
      %518 = vmatprep.subr.bf16.mxu0 0
      %519 = vmatpush1.bf16.msra.mxu0 0
      %520 = vmatprep.subr.bf16.mxu0 0
      %521 = vmatpush1.bf16.msra.mxu0 0
      %522 = vmatprep.subr.bf16.mxu0 0
      %523 = vmatpush1.bf16.msra.mxu0 0
      %524 = vmatprep.subr.bf16.mxu0 0
      %525 = vmatpush1.bf16.msra.mxu0 0
      %526 = vmatprep.subr.bf16.mxu0 0
      %527 = vmatpush1.bf16.msra.mxu0 0
      %528 = vmatprep.subr.bf16.mxu0 0
      %529 = vmatpush1.bf16.msra.mxu0 %v488
      %530 = vmatprep.subr.bf16.mxu0 0
      %531 = vmatpush1.bf16.msra.mxu0 %v487
      %532 = vmatprep.subr.bf16.mxu0 0
      %533 = vmatpush2.bf16.msra.mxu0 0
      %534 = vmatprep.subr.bf16.mxu0 0
      %535 = vmatpush2.bf16.msra.mxu0 0
      %536 = vmatprep.subr.bf16.mxu0 0
      %537 = vmatpush2.bf16.msra.mxu0 0
      %538 = vmatprep.subr.bf16.mxu0 0
      %539 = vmatpush2.bf16.msra.mxu0 0
      %540 = vmatprep.subr.bf16.mxu0 0
      %541 = vmatpush2.bf16.msra.mxu0 0
      %542 = vmatprep.subr.bf16.mxu0 0
      %543 = vmatpush2.bf16.msra.mxu0 0
      %544 = vmatprep.subr.bf16.mxu0 0
      %545 = vmatpush2.bf16.msra.mxu0 0
      %546 = vmatprep.subr.bf16.mxu0 0
      %547 = vmatpush2.bf16.msra.mxu0 0
      %548 = vmatprep.mubr.bf16.mxu0 0
      %549 = vmatmul.mubr.bf16.gmra.mxu0 %v493
      %v550 = vpop.f32.mrf.mxu0
      %v551 = vadd.f32 %v477, %v550
      %v552 = vpop.f32.mrf.mxu0
      %v553 = vpop.f32.mrf.mxu0
      %v554 = vadd.f32 %v477, %v553
      %v555 = vpop.f32.mrf.mxu0
      %556 = vmatprep.mubr.bf16.mxu0 0
      %557 = vmatmul.mubr.bf16.gmra.mxu0 %v496
      %v558 = vpop.f32.mrf.mxu0
      %v559 = vadd.f32 %v477, %v558
      %v560 = vpop.f32.mrf.mxu0
      %v561 = vpop.f32.mrf.mxu0
      %v562 = vadd.f32 %v477, %v561
      %v563 = vpop.f32.mrf.mxu0
      %564 = vmatprep.mubr.bf16.mxu0 0
      %565 = vmatmul.mubr.bf16.gmra.mxu0 %v499
      %v566 = vpop.f32.mrf.mxu0
      %v567 = vadd.f32 %v477, %v566
      %v568 = vpop.f32.mrf.mxu0
      %v569 = vpop.f32.mrf.mxu0
      %v570 = vadd.f32 %v477, %v569
      %v571 = vpop.f32.mrf.mxu0
      %572 = vmatprep.mubr.bf16.mxu0 0
      %573 = vmatmul.mubr.bf16.gmra.mxu0 %v502
      %v574 = vpop.f32.mrf.mxu0
      %v575 = vadd.f32 %v477, %v574
      %v576 = vpop.f32.mrf.mxu0
      %v577 = vpop.f32.mrf.mxu0
      %v578 = vadd.f32 %v477, %v577
      %v579 = vpop.f32.mrf.mxu0
      %580 = vmatprep.mubr.bf16.mxu0 0
      %581 = vmatmul.mubr.bf16.gmra.mxu0 %v505
      %v582 = vpop.f32.mrf.mxu0
      %v583 = vadd.f32 %v477, %v582
      %v584 = vpop.f32.mrf.mxu0
      %v585 = vpop.f32.mrf.mxu0
      %v586 = vadd.f32 %v477, %v585
      %v587 = vpop.f32.mrf.mxu0
      %588 = vmatprep.mubr.bf16.mxu0 0
      %589 = vmatmul.mubr.bf16.gmra.mxu0 %v508
      %v590 = vpop.f32.mrf.mxu0
      %v591 = vadd.f32 %v477, %v590
      %v592 = vpop.f32.mrf.mxu0
      %v593 = vpop.f32.mrf.mxu0
      %v594 = vadd.f32 %v477, %v593
      %v595 = vpop.f32.mrf.mxu0
      %596 = vmatprep.mubr.bf16.mxu0 0
      %597 = vmatmul.mubr.bf16.gmra.mxu0 %v511
      %v598 = vpop.f32.mrf.mxu0
      %v599 = vadd.f32 %v477, %v598
      %v600 = vpop.f32.mrf.mxu0
      %v601 = vpop.f32.mrf.mxu0
      %v602 = vadd.f32 %v477, %v601
      %v603 = vpop.f32.mrf.mxu0
      %604 = vmatprep.mubr.bf16.mxu0 0
      %605 = vmatmul.mubr.bf16.gmra.mxu0 %v514
      %v606 = vpop.f32.mrf.mxu0
      %v607 = vadd.f32 %v477, %v606
      %v608 = vpop.f32.mrf.mxu0
      %v609 = vpop.f32.mrf.mxu0
      %v610 = vadd.f32 %v477, %v609
      %v611 = vpop.f32.mrf.mxu0
      %612 = vdwg.mxu0
      %v613 = vmax.f32 %v551, 0.0
      %v614 = vmax.f32 %v554, 0.0
      %v615 = vmax.f32 %v559, 0.0
      %v616 = vmax.f32 %v562, 0.0
      %v617 = vmax.f32 %v567, 0.0
      %v618 = vmax.f32 %v570, 0.0
      %v619 = vmax.f32 %v575, 0.0
      %v620 = vmax.f32 %v578, 0.0
      %v621 = vmax.f32 %v583, 0.0
      %v622 = vmax.f32 %v586, 0.0
      %v623 = vmax.f32 %v591, 0.0
      %v624 = vmax.f32 %v594, 0.0
      %v625 = vmax.f32 %v599, 0.0
      %v626 = vmax.f32 %v602, 0.0
      %v627 = vmax.f32 %v607, 0.0
      %v628 = vmax.f32 %v610, 0.0
      %v629 = vpack.c.bf16 %v614, %v613
      %v630 = vpack.c.bf16 %v616, %v615
      %v631 = vpack.c.bf16 %v618, %v617
      %v632 = vpack.c.bf16 %v620, %v619
      %v633 = vpack.c.bf16 %v622, %v621
      %v634 = vpack.c.bf16 %v624, %v623
      %v635 = vpack.c.bf16 %v626, %v625
      %v636 = vpack.c.bf16 %v628, %v627
      %v637 = vld [vmem:[%s5] sm:$0xf]
      %v638 = vld [vmem:[%s5 + $0x4] sm:$0xf]
      %v639 = vld [vmem:[%s5 + $0x8] sm:$0xf]
      %v640 = vld [vmem:[%s5 + $0xc] sm:$0xf]
      %v641 = vld [vmem:[%s6] sm:$0x1]
      %v643 = vlaneseq
      %v644 = vshrl.u32 %v643, 7
      %v645 = vsub.s32 0, %v644
      %v646 = vrot.slane %v641, %v645
      %v652 = vunpack.c.l.b16 %v637
      %v653 = vunpack.c.l.b16 %v638
      %v654 = vunpack.c.l.b16 %v639
      %v655 = vunpack.c.l.b16 %v640
      %v656 = vpack.c.b16 %v653, %v652
      %v657 = vpack.c.b16 %v655, %v654
      %v661 = vsel %vm491, %v629, 0
      %v664 = vsel %vm491, %v630, 0
      %v667 = vsel %vm491, %v631, 0
      %v670 = vsel %vm491, %v632, 0
      %v673 = vsel %vm491, %v633, 0
      %v676 = vsel %vm491, %v634, 0
      %v679 = vsel %vm491, %v635, 0
      %v682 = vsel %vm491, %v636, 0
      %684 = vmatprep.subr.bf16.mxu0 0
      %685 = vmatpush1.bf16.msra.mxu0 0
      %686 = vmatprep.subr.bf16.mxu0 0
      %687 = vmatpush1.bf16.msra.mxu0 0
      %688 = vmatprep.subr.bf16.mxu0 0
      %689 = vmatpush1.bf16.msra.mxu0 0
      %690 = vmatprep.subr.bf16.mxu0 0
      %691 = vmatpush1.bf16.msra.mxu0 0
      %692 = vmatprep.subr.bf16.mxu0 0
      %693 = vmatpush1.bf16.msra.mxu0 0
      %694 = vmatprep.subr.bf16.mxu0 0
      %695 = vmatpush1.bf16.msra.mxu0 0
      %696 = vmatprep.subr.bf16.mxu0 0
      %697 = vmatpush1.bf16.msra.mxu0 %v657
      %698 = vmatprep.subr.bf16.mxu0 0
      %699 = vmatpush1.bf16.msra.mxu0 %v656
      %700 = vmatprep.subr.bf16.mxu0 0
      %701 = vmatpush2.bf16.msra.mxu0 0
      %702 = vmatprep.subr.bf16.mxu0 0
      %703 = vmatpush2.bf16.msra.mxu0 0
      %704 = vmatprep.subr.bf16.mxu0 0
      %705 = vmatpush2.bf16.msra.mxu0 0
      %706 = vmatprep.subr.bf16.mxu0 0
      %707 = vmatpush2.bf16.msra.mxu0 0
      %708 = vmatprep.subr.bf16.mxu0 0
      %709 = vmatpush2.bf16.msra.mxu0 0
      %710 = vmatprep.subr.bf16.mxu0 0
      %711 = vmatpush2.bf16.msra.mxu0 0
      %712 = vmatprep.subr.bf16.mxu0 0
      %713 = vmatpush2.bf16.msra.mxu0 0
      %714 = vmatprep.subr.bf16.mxu0 0
      %715 = vmatpush2.bf16.msra.mxu0 0
      %716 = vmatprep.mubr.bf16.mxu0 0
      %717 = vmatmul.mubr.bf16.gmra.mxu0 %v661
      %v718 = vpop.f32.mrf.mxu0
      %v719 = vadd.f32 %v646, %v718
      %v720 = vpop.f32.mrf.mxu0
      %v721 = vpop.f32.mrf.mxu0
      %v722 = vadd.f32 %v646, %v721
      %v723 = vpop.f32.mrf.mxu0
      %724 = vmatprep.mubr.bf16.mxu0 0
      %725 = vmatmul.mubr.bf16.gmra.mxu0 %v664
      %v726 = vpop.f32.mrf.mxu0
      %v727 = vadd.f32 %v646, %v726
      %v728 = vpop.f32.mrf.mxu0
      %v729 = vpop.f32.mrf.mxu0
      %v730 = vadd.f32 %v646, %v729
      %v731 = vpop.f32.mrf.mxu0
      %732 = vmatprep.mubr.bf16.mxu0 0
      %733 = vmatmul.mubr.bf16.gmra.mxu0 %v667
      %v734 = vpop.f32.mrf.mxu0
      %v735 = vadd.f32 %v646, %v734
      %v736 = vpop.f32.mrf.mxu0
      %v737 = vpop.f32.mrf.mxu0
      %v738 = vadd.f32 %v646, %v737
      %v739 = vpop.f32.mrf.mxu0
      %740 = vmatprep.mubr.bf16.mxu0 0
      %741 = vmatmul.mubr.bf16.gmra.mxu0 %v670
      %v742 = vpop.f32.mrf.mxu0
      %v743 = vadd.f32 %v646, %v742
      %v744 = vpop.f32.mrf.mxu0
      %v745 = vpop.f32.mrf.mxu0
      %v746 = vadd.f32 %v646, %v745
      %v747 = vpop.f32.mrf.mxu0
      %748 = vmatprep.mubr.bf16.mxu0 0
      %749 = vmatmul.mubr.bf16.gmra.mxu0 %v673
      %v750 = vpop.f32.mrf.mxu0
      %v751 = vadd.f32 %v646, %v750
      %v752 = vpop.f32.mrf.mxu0
      %v753 = vpop.f32.mrf.mxu0
      %v754 = vadd.f32 %v646, %v753
      %v755 = vpop.f32.mrf.mxu0
      %756 = vmatprep.mubr.bf16.mxu0 0
      %757 = vmatmul.mubr.bf16.gmra.mxu0 %v676
      %v758 = vpop.f32.mrf.mxu0
      %v759 = vadd.f32 %v646, %v758
      %v760 = vpop.f32.mrf.mxu0
      %v761 = vpop.f32.mrf.mxu0
      %v762 = vadd.f32 %v646, %v761
      %v763 = vpop.f32.mrf.mxu0
      %764 = vmatprep.mubr.bf16.mxu0 0
      %765 = vmatmul.mubr.bf16.gmra.mxu0 %v679
      %v766 = vpop.f32.mrf.mxu0
      %v767 = vadd.f32 %v646, %v766
      %v768 = vpop.f32.mrf.mxu0
      %v769 = vpop.f32.mrf.mxu0
      %v770 = vadd.f32 %v646, %v769
      %v771 = vpop.f32.mrf.mxu0
      %772 = vmatprep.mubr.bf16.mxu0 0
      %773 = vmatmul.mubr.bf16.gmra.mxu0 %v682
      %v774 = vpop.f32.mrf.mxu0
      %v775 = vadd.f32 %v646, %v774
      %v776 = vpop.f32.mrf.mxu0
      %v777 = vpop.f32.mrf.mxu0
      %v778 = vadd.f32 %v646, %v777
      %v779 = vpop.f32.mrf.mxu0
      %780 = vdwg.mxu0
      %vm781 = vcmask 64512
      %v782 = vsel %vm781, %v719, -inf
      %783 = vmax.xlane.f32.xlu0 %v782
      %v784 = vpop.xlane.xlu0 %783
      %v785 = vsel %vm781, %v722, -inf
      %786 = vmax.xlane.f32.xlu0 %v785
      %v787 = vpop.xlane.xlu0 %786
      %v788 = vsel %vm781, %v727, -inf
      %789 = vmax.xlane.f32.xlu0 %v788
      %v790 = vpop.xlane.xlu0 %789
      %v791 = vsel %vm781, %v730, -inf
      %792 = vmax.xlane.f32.xlu0 %v791
      %v793 = vpop.xlane.xlu0 %792
      %v794 = vsel %vm781, %v735, -inf
      %795 = vmax.xlane.f32.xlu0 %v794
      %v796 = vpop.xlane.xlu0 %795
      %v797 = vsel %vm781, %v738, -inf
      %798 = vmax.xlane.f32.xlu0 %v797
      %v799 = vpop.xlane.xlu0 %798
      %v800 = vsel %vm781, %v743, -inf
      %801 = vmax.xlane.f32.xlu0 %v800
      %v802 = vpop.xlane.xlu0 %801
      %v803 = vsel %vm781, %v746, -inf
      %804 = vmax.xlane.f32.xlu0 %v803
      %v805 = vpop.xlane.xlu0 %804
      %v806 = vsel %vm781, %v751, -inf
      %807 = vmax.xlane.f32.xlu0 %v806
      %v808 = vpop.xlane.xlu0 %807
      %v809 = vsel %vm781, %v754, -inf
      %810 = vmax.xlane.f32.xlu0 %v809
      %v811 = vpop.xlane.xlu0 %810
      %v812 = vsel %vm781, %v759, -inf
      %813 = vmax.xlane.f32.xlu0 %v812
      %v814 = vpop.xlane.xlu0 %813
      %v815 = vsel %vm781, %v762, -inf
      %816 = vmax.xlane.f32.xlu0 %v815
      %v817 = vpop.xlane.xlu0 %816
      %v818 = vsel %vm781, %v767, -inf
      %819 = vmax.xlane.f32.xlu0 %v818
      %v820 = vpop.xlane.xlu0 %819
      %v821 = vsel %vm781, %v770, -inf
      %822 = vmax.xlane.f32.xlu0 %v821
      %v823 = vpop.xlane.xlu0 %822
      %v824 = vsel %vm781, %v775, -inf
      %825 = vmax.xlane.f32.xlu0 %v824
      %v826 = vpop.xlane.xlu0 %825
      %v827 = vsel %vm781, %v778, -inf
      %828 = vmax.xlane.f32.xlu0 %v827
      %v829 = vpop.xlane.xlu0 %828
      %v830 = vsub.f32 %v719, %v784
      %v831 = vsub.f32 %v722, %v787
      %v832 = vsub.f32 %v727, %v790
      %v833 = vsub.f32 %v730, %v793
      %v834 = vsub.f32 %v735, %v796
      %v835 = vsub.f32 %v738, %v799
      %v836 = vsub.f32 %v743, %v802
      %v837 = vsub.f32 %v746, %v805
      %v838 = vsub.f32 %v751, %v808
      %v839 = vsub.f32 %v754, %v811
      %v840 = vsub.f32 %v759, %v814
      %v841 = vsub.f32 %v762, %v817
      %v842 = vsub.f32 %v767, %v820
      %v843 = vsub.f32 %v770, %v823
      %v844 = vsub.f32 %v775, %v826
      %v845 = vsub.f32 %v778, %v829
      %v846 = vmul.f32 %v830, 1.442695
      %v847 = vpow.pop %v846
      %v848 = vmul.f32 %v831, 1.442695
      %v849 = vpow.pop %v848
      %v850 = vmul.f32 %v832, 1.442695
      %v851 = vpow.pop %v850
      %v852 = vmul.f32 %v833, 1.442695
      %v853 = vpow.pop %v852
      %v854 = vmul.f32 %v834, 1.442695
      %v855 = vpow.pop %v854
      %v856 = vmul.f32 %v835, 1.442695
      %v857 = vpow.pop %v856
      %v858 = vmul.f32 %v836, 1.442695
      %v859 = vpow.pop %v858
      %v860 = vmul.f32 %v837, 1.442695
      %v861 = vpow.pop %v860
      %v862 = vmul.f32 %v838, 1.442695
      %v863 = vpow.pop %v862
      %v864 = vmul.f32 %v839, 1.442695
      %v865 = vpow.pop %v864
      %v866 = vmul.f32 %v840, 1.442695
      %v867 = vpow.pop %v866
      %v868 = vmul.f32 %v841, 1.442695
      %v869 = vpow.pop %v868
      %v870 = vmul.f32 %v842, 1.442695
      %v871 = vpow.pop %v870
      %v872 = vmul.f32 %v843, 1.442695
      %v873 = vpow.pop %v872
      %v874 = vmul.f32 %v844, 1.442695
      %v875 = vpow.pop %v874
      %v876 = vmul.f32 %v845, 1.442695
      %v877 = vpow.pop %v876
      %v878 = vsel %vm781, %v847, 0.0
      %879 = vadd.xlane.f32.xlu0 %v878
      %v880 = vpop.xlane.xlu0 %879
      %v881 = vsel %vm781, %v849, 0.0
      %882 = vadd.xlane.f32.xlu0 %v881
      %v883 = vpop.xlane.xlu0 %882
      %v884 = vsel %vm781, %v851, 0.0
      %885 = vadd.xlane.f32.xlu0 %v884
      %v886 = vpop.xlane.xlu0 %885
      %v887 = vsel %vm781, %v853, 0.0
      %888 = vadd.xlane.f32.xlu0 %v887
      %v889 = vpop.xlane.xlu0 %888
      %v890 = vsel %vm781, %v855, 0.0
      %891 = vadd.xlane.f32.xlu0 %v890
      %v892 = vpop.xlane.xlu0 %891
      %v893 = vsel %vm781, %v857, 0.0
      %894 = vadd.xlane.f32.xlu0 %v893
      %v895 = vpop.xlane.xlu0 %894
      %v896 = vsel %vm781, %v859, 0.0
      %897 = vadd.xlane.f32.xlu0 %v896
      %v898 = vpop.xlane.xlu0 %897
      %v899 = vsel %vm781, %v861, 0.0
      %900 = vadd.xlane.f32.xlu0 %v899
      %v901 = vpop.xlane.xlu0 %900
      %v902 = vsel %vm781, %v863, 0.0
      %903 = vadd.xlane.f32.xlu0 %v902
      %v904 = vpop.xlane.xlu0 %903
      %v905 = vsel %vm781, %v865, 0.0
      %906 = vadd.xlane.f32.xlu0 %v905
      %v907 = vpop.xlane.xlu0 %906
      %v908 = vsel %vm781, %v867, 0.0
      %909 = vadd.xlane.f32.xlu0 %v908
      %v910 = vpop.xlane.xlu0 %909
      %v911 = vsel %vm781, %v869, 0.0
      %912 = vadd.xlane.f32.xlu0 %v911
      %v913 = vpop.xlane.xlu0 %912
      %v914 = vsel %vm781, %v871, 0.0
      %915 = vadd.xlane.f32.xlu0 %v914
      %v916 = vpop.xlane.xlu0 %915
      %v917 = vsel %vm781, %v873, 0.0
      %918 = vadd.xlane.f32.xlu0 %v917
      %v919 = vpop.xlane.xlu0 %918
      %v920 = vsel %vm781, %v875, 0.0
      %921 = vadd.xlane.f32.xlu0 %v920
      %v922 = vpop.xlane.xlu0 %921
      %v923 = vsel %vm781, %v877, 0.0
      %924 = vadd.xlane.f32.xlu0 %v923
      %v925 = vpop.xlane.xlu0 %924
      %v926 = vrcp.pop %v880
      %v927 = vmul.f32 %v847, %v926
      %v928 = vrcp.pop %v883
      %v929 = vmul.f32 %v849, %v928
      %v930 = vrcp.pop %v886
      %v931 = vmul.f32 %v851, %v930
      %v932 = vrcp.pop %v889
      %v933 = vmul.f32 %v853, %v932
      %v934 = vrcp.pop %v892
      %v935 = vmul.f32 %v855, %v934
      %v936 = vrcp.pop %v895
      %v937 = vmul.f32 %v857, %v936
      %v938 = vrcp.pop %v898
      %v939 = vmul.f32 %v859, %v938
      %v940 = vrcp.pop %v901
      %v941 = vmul.f32 %v861, %v940
      %v942 = vrcp.pop %v904
      %v943 = vmul.f32 %v863, %v942
      %v944 = vrcp.pop %v907
      %v945 = vmul.f32 %v865, %v944
      %v946 = vrcp.pop %v910
      %v947 = vmul.f32 %v867, %v946
      %v948 = vrcp.pop %v913
      %v949 = vmul.f32 %v869, %v948
      %v950 = vrcp.pop %v916
      %v951 = vmul.f32 %v871, %v950
      %v952 = vrcp.pop %v919
      %v953 = vmul.f32 %v873, %v952
      %v954 = vrcp.pop %v922
      %v955 = vmul.f32 %v875, %v954
      %v956 = vrcp.pop %v925
      %v957 = vmul.f32 %v877, %v956
      %958 = vst.msk [vmem:[%s280] sm:$0xff] %vm781, %v927
      %959 = vst.msk [vmem:[%s280 + $0x8] sm:$0xff] %vm781, %v929
      %960 = vst.msk [vmem:[%s280 + $0x10] sm:$0xff] %vm781, %v931
      %961 = vst.msk [vmem:[%s280 + $0x18] sm:$0xff] %vm781, %v933
      %962 = vst.msk [vmem:[%s280 + $0x20] sm:$0xff] %vm781, %v935
      %963 = vst.msk [vmem:[%s280 + $0x28] sm:$0xff] %vm781, %v937
      %964 = vst.msk [vmem:[%s280 + $0x30] sm:$0xff] %vm781, %v939
      %965 = vst.msk [vmem:[%s280 + $0x38] sm:$0xff] %vm781, %v941
      %966 = vst.msk [vmem:[%s280 + $0x40] sm:$0xff] %vm781, %v943
      %967 = vst.msk [vmem:[%s280 + $0x48] sm:$0xff] %vm781, %v945
      %968 = vst.msk [vmem:[%s280 + $0x50] sm:$0xff] %vm781, %v947
      %969 = vst.msk [vmem:[%s280 + $0x58] sm:$0xff] %vm781, %v949
      %970 = vst.msk [vmem:[%s280 + $0x60] sm:$0xff] %vm781, %v951
      %971 = vst.msk [vmem:[%s280 + $0x68] sm:$0xff] %vm781, %v953
      %972 = vst.msk [vmem:[%s280 + $0x70] sm:$0xff] %vm781, %v955
      %973 = vst.msk [vmem:[%s280 + $0x78] sm:$0xff] %vm781, %v957
      %s974 = smul.u32 16, %s18
      %p975 = scmp.lt.s32.totalorder %s974, 31
      %s976 = scalar_select %p975, %s974, 31
      %s977 = smul.addr %s976, 8
      %s978 = scalar_lea.vmem %s7, %s977
      // Predicated region
      $region49: #{optimization_model_forward.1} parent=47 // pred_check
        %p979 = pneg %p188
      $region50: #{optimization_model_forward.1} parent=47 // pred_check_branch
        %981 = sbr.rel (%p979) target = $region52
      $region51: #{optimization_model_forward.1} parent=47 // pred_region
        %s982 = smul.u32 16, %s18
      $region52: #{optimization_model_forward.1} parent=47 // pred_fallthru
        _
    $region48: #{optimization_model_forward.1} parent=5 // pred_fallthru
      _
    %p983 = scmp.le.s32.totalorder 2, %s13
    // Predicated region
    $region53: #{optimization_model_forward.1} parent=5 // pred_check
      %p984 = pneg %p983
    $region54: #{optimization_model_forward.1} parent=5 // pred_check_branch
      %986 = sbr.rel (%p984) target = $region56
    $region55: #{optimization_model_forward.1} parent=5 // pred_region
      %s987 = ssub.s32 %s13, 2
      // Predicated region
      $region57: #{optimization_model_forward.1} parent=55 // pred_check
        %p988 = pneg %p194
      $region58: #{optimization_model_forward.1} parent=55 // pred_check_branch
        %990 = sbr.rel (%p988) target = $region60
      $region59: #{optimization_model_forward.1} parent=55 // pred_region
        %s991 = smul.u32 16, %s19
        %p992 = scmp.lt.s32.totalorder %s991, 31
        %s993 = scalar_select %p992, %s991, 31
        %s994 = smul.addr %s993, 8
        %s995 = scalar_lea.vmem %s7, %s994
      $region60: #{optimization_model_forward.1} parent=55 // pred_fallthru
        _
    $region56: #{optimization_model_forward.1} parent=5 // pred_fallthru
      _
  $region6: #{optimization_model_forward.1} parent=0 // loop_footer
    %s17 = sadd.s32 1, %s13
  $region7: #{optimization_model_forward.1} parent=0 // loop_footer_branch
    %12 = sbr.rel target = $region3
  $region8: #{optimization_model_forward.1} parent=0 // loop_exit
    _

</llo_original>
